<compile_context>
chip_gen: v7x
topology: tpu7x:2x2x1
jax: 0.10.0
libtpu: 0.0.40
codegen_flags: <defaults>
</compile_context>

<pallas_src>
import functools

import jax
import jax.numpy as jnp
from jax.experimental import pallas as pl
from jax.experimental.pallas import tpu as pltpu

EPSILON = 1e-6
LANES = 128
SUBLANES = 8


def _is_v7x():
    try:
        return "v7" in jax.devices()[0].device_kind.lower()
    except Exception:
        return False


def _tm_max():
    # v7x: 3.2 TB/s HBM -> push tiles harder (16 MiB of double-buffered inputs,
    # under its 32 MiB scoped-VMEM default).  v5e/v6e: 4096 rows (8 MiB) fits
    # even v5e's 16 MiB scoped default without raising vmem_limit_bytes.
    return 8192 if _is_v7x() else 4096


def _default_nsplit():
    # 2 TensorCores per chip only on v7x; on v5e/v6e the grid runs on one TC,
    # so a 2-way split would only add duplicate DMA / extra steps.
    return 2 if _is_v7x() else 1


def _dice_kernel(logits_ref, targets_ref, inter_ref, denom_ref, *,
                 tm, inner_steps, full_rows, rem):
    c = pl.program_id(0)          # TensorCore split (parallel axis)
    i = pl.program_id(1)          # streaming step within the split (arbitrary)

    @pl.when(i == 0)
    def _():
        inter_ref[...] = jnp.zeros_like(inter_ref)
        denom_ref[...] = jnp.zeros_like(denom_ref)

    # Unclamped logical block index.  The input index_map clamps the DMA so it
    # never walks out of bounds; padded rows, the partial tail row and clamped
    # duplicate iterations are masked out below so they contribute nothing.
    b = c * inner_steps + i

    # Sigmoid + accumulation in f32 regardless of input dtype
    # (v5e has no bf16 VPU/EUP path).
    p = jax.nn.sigmoid(logits_ref[...].astype(jnp.float32))
    t = targets_ref[...].astype(jnp.float32)

    def accumulate(pv, tv):
        # (tm,128) -> (tm//8, 8, 128): vreg-aligned split, so the axis-0 sum is
        # pure VPU vreg adds into a single (8,128) tile; sum(p)+sum(t)==sum(p+t)
        # so only two accumulators are needed.
        inter_ref[...] += (pv * tv).reshape(tm // SUBLANES, SUBLANES, LANES).sum(axis=0)
        denom_ref[...] += (pv + tv).reshape(tm // SUBLANES, SUBLANES, LANES).sum(axis=0)

    # Fast path: every row of this block is fully valid -> no iota/mask work.
    block_clean = (b + 1) * tm <= full_rows

    @pl.when(block_clean)
    def _():
        accumulate(p, t)

    # Slow path: block reaches the tail row, padded rows, or is a clamped
    # duplicate iteration.  Row-level mask (int32-safe) + lane mask on the
    # single partial row.
    @pl.when(jnp.logical_not(block_clean))
    def _():
        row_ids = jax.lax.broadcasted_iota(jnp.int32, (tm, LANES), 0)
        col_ids = jax.lax.broadcasted_iota(jnp.int32, (tm, LANES), 1)
        g_row = b * tm + row_ids
        mask = (g_row < full_rows) | ((g_row == full_rows) & (col_ids < rem))
        accumulate(jnp.where(mask, p, 0.0), jnp.where(mask, t, 0.0))


def dice_loss(logits, targets, epsilon=EPSILON):
    """Pallas TPU implementation of DiceLoss.forward (returns a scalar)."""
    logits_flat = jnp.reshape(logits, (-1,))
    targets_flat = jnp.reshape(targets, (-1,))
    n = logits_flat.shape[0]

    # Pad (zeros) to a whole (8,128) vreg tile only when needed so the row
    # count is a multiple of 8; padded elements are masked out in-kernel, so
    # the pad value is irrelevant.
    tile_elems = SUBLANES * LANES
    pad = (-n) % tile_elems
    if pad:
        logits_flat = jnp.pad(logits_flat, (0, pad))
        targets_flat = jnp.pad(targets_flat, (0, pad))

    rows = logits_flat.shape[0] // LANES
    logits_2d = logits_flat.reshape(rows, LANES)
    targets_2d = targets_flat.reshape(rows, LANES)

    # Block sizing: full-array block for small inputs, else TM_MAX rows.
    tm_max = _tm_max()
    tm = rows if rows < tm_max else tm_max
    total_blocks = pl.cdiv(rows, tm)
    nsplit = min(_default_nsplit(), total_blocks)
    inner_steps = pl.cdiv(total_blocks, nsplit)

    full_rows = n // LANES      # number of fully-valid rows
    rem = n % LANES             # valid lanes in the single partial row (if any)

    def in_index_map(c, i):
        # Clamp so the DMA never reads past the last block; the redundant
        # (clamped) iterations contribute nothing thanks to the in-kernel mask.
        return (jnp.minimum(c * inner_steps + i, total_blocks - 1), 0)

    kernel = functools.partial(
        _dice_kernel, tm=tm, inner_steps=inner_steps,
        full_rows=full_rows, rem=rem)

    in_bytes = n * (jnp.dtype(logits.dtype).itemsize
                    + jnp.dtype(targets.dtype).itemsize)
    out_bytes = 2 * nsplit * SUBLANES * LANES * 4
    cost = pl.CostEstimate(flops=5 * n, transcendentals=n,
                           bytes_accessed=int(in_bytes + out_bytes))

    inter_parts, denom_parts = pl.pallas_call(
        kernel,
        out_shape=(
            jax.ShapeDtypeStruct((nsplit * SUBLANES, LANES), jnp.float32),
            jax.ShapeDtypeStruct((nsplit * SUBLANES, LANES), jnp.float32),
        ),
        grid_spec=pltpu.PrefetchScalarGridSpec(
            num_scalar_prefetch=0,
            grid=(nsplit, inner_steps),
            in_specs=[
                pl.BlockSpec((tm, LANES), in_index_map),
                pl.BlockSpec((tm, LANES), in_index_map),
            ],
            out_specs=[
                # Same block across the inner axis -> resident accumulator;
                # per-split (8,128) lane-dense partials.
                pl.BlockSpec((SUBLANES, LANES), lambda c, i: (c, 0)),
                pl.BlockSpec((SUBLANES, LANES), lambda c, i: (c, 0)),
            ],
        ),
        compiler_params=pltpu.CompilerParams(
            dimension_semantics=("parallel", "arbitrary"),
        ),
        cost_estimate=cost,
    )(logits_2d, targets_2d)

    # Tiny scalar epilogue: combine per-core lane partials outside the kernel
    # so the two v7x cores never need to synchronize in-kernel.
    intersection = jnp.sum(inter_parts)
    denom = jnp.sum(denom_parts)
    dice = (2.0 * intersection + epsilon) / (denom + epsilon)
    return 1.0 - dice


def dice_loss_ref(logits, targets, epsilon=EPSILON):
    """Pure-JAX reference matching the PyTorch module."""
    probs = jax.nn.sigmoid(logits).reshape(-1)
    t = targets.reshape(-1)
    intersection = jnp.sum(probs * t)
    dice = (2.0 * intersection + epsilon) / (jnp.sum(probs) + jnp.sum(t) + epsilon)
    return 1.0 - dice


if __name__ == "__main__":
    key = jax.random.PRNGKey(0)
    k1, k2, k3, k4 = jax.random.split(key, 4)

    # Small NCHW segmentation-style inputs (1024-aligned element count).
    B, C, H, W = 2, 4, 16, 16
    logits = jax.random.normal(k1, (B, C, H, W), dtype=jnp.float32)
    targets = (jax.random.uniform(k2, (B, C, H, W)) > 0.5).astype(jnp.float32)

    loss = jax.block_until_ready(dice_loss(logits, targets))
    ref = dice_loss_ref(logits, targets)
    assert jnp.allclose(loss, ref, atol=1e-5, rtol=1e-5), (loss, ref)

    # Non-aligned element count exercises the in-kernel tail-mask slow path.
    logits2 = jax.random.normal(k3, (2, 3, 13, 17), dtype=jnp.float32)
    targets2 = (jax.random.uniform(k4, (2, 3, 13, 17)) > 0.5).astype(jnp.float32)
    loss2 = jax.block_until_ready(dice_loss(logits2, targets2))
    ref2 = dice_loss_ref(logits2, targets2)
    assert jnp.allclose(loss2, ref2, atol=1e-5, rtol=1e-5), (loss2, ref2)

    print("KERNEL_OK")
</pallas_src>

<mosaic_0001>
module attributes {stable_mosaic.version = 11 : i64} {
  func.func @_dice_kernel(%arg0: i32, %arg1: i32, %arg2: memref<16x128xf32, #tpu.memory_space<vmem>>, %arg3: memref<16x128xf32, #tpu.memory_space<vmem>>, %arg4: memref<8x128xf32, #tpu.memory_space<vmem>>, %arg5: memref<8x128xf32, #tpu.memory_space<vmem>>) attributes {dimension_semantics = [#tpu.dimension_semantics<parallel>, #tpu.dimension_semantics<arbitrary>], iteration_bounds = array<i64: 1, 1>, scalar_prefetch = 0 : i64, scratch_operands = 0 : i64, tpu.core_type = #tpu.core_type<tc>, window_params = [{transform_indices = @transform_0, window_bounds = array<i64: 16, 128>}, {transform_indices = @transform_1, window_bounds = array<i64: 16, 128>}, {transform_indices = @transform_2, window_bounds = array<i64: 8, 128>}, {transform_indices = @transform_3, window_bounds = array<i64: 8, 128>}]} {
    %c0_i32 = arith.constant 0 : i32
    %0 = arith.cmpi eq, %arg1, %c0_i32 : i32
    %1 = arith.extui %0 : i1 to i32
    %c0_i32_0 = arith.constant 0 : i32
    %2 = arith.cmpi ne, %1, %c0_i32_0 : i32
    scf.if %2 {
      %cst_8 = arith.constant 0.000000e+00 : f32
      %20 = vector.broadcast %cst_8 : f32 to vector<8x128xf32>
      %c0_9 = arith.constant 0 : index
      %c0_10 = arith.constant 0 : index
      %21 = vector.load %arg4[%c0_9, %c0_10] : memref<8x128xf32, #tpu.memory_space<vmem>>, vector<8x128xf32>
      tpu.vector_store %arg4[%c0_9, %c0_10], %20 {strides = array<i32>} : memref<8x128xf32, #tpu.memory_space<vmem>>, vector<8x128xf32>,
      %cst_11 = arith.constant 0.000000e+00 : f32
      %22 = vector.broadcast %cst_11 : f32 to vector<8x128xf32>
      %c0_12 = arith.constant 0 : index
      %c0_13 = arith.constant 0 : index
      %23 = vector.load %arg5[%c0_12, %c0_13] : memref<8x128xf32, #tpu.memory_space<vmem>>, vector<8x128xf32>
      tpu.vector_store %arg5[%c0_12, %c0_13], %22 {strides = array<i32>} : memref<8x128xf32, #tpu.memory_space<vmem>>, vector<8x128xf32>,
    } else {
    }
    %c1_i32 = arith.constant 1 : i32
    %3 = arith.muli %arg0, %c1_i32 : i32
    %4 = arith.addi %3, %arg1 : i32
    %c0 = arith.constant 0 : index
    %c0_1 = arith.constant 0 : index
    %5 = vector.load %arg2[%c0, %c0_1] : memref<16x128xf32, #tpu.memory_space<vmem>>, vector<16x128xf32>
    %6 = arith.negf %5 : vector<16x128xf32>
    %7 = math.exp %6 : vector<16x128xf32>
    %cst = arith.constant 1.000000e+00 : f32
    %8 = vector.broadcast %cst : f32 to vector<16x128xf32>
    %9 = arith.addf %8, %7 : vector<16x128xf32>
    %10 = arith.divf %8, %9 : vector<16x128xf32>
    %c0_2 = arith.constant 0 : index
    %c0_3 = arith.constant 0 : index
    %11 = vector.load %arg3[%c0_2, %c0_3] : memref<16x128xf32, #tpu.memory_space<vmem>>, vector<16x128xf32>
    %c1_i32_4 = arith.constant 1 : i32
    %12 = arith.addi %4, %c1_i32_4 : i32
    %c16_i32 = arith.constant 16 : i32
    %13 = arith.muli %12, %c16_i32 : i32
    %c16_i32_5 = arith.constant 16 : i32
    %14 = arith.cmpi sle, %13, %c16_i32_5 : i32
    %15 = arith.extui %14 : i1 to i32
    %c0_i32_6 = arith.constant 0 : i32
    %16 = arith.cmpi ne, %15, %c0_i32_6 : i32
    scf.if %16 {
      %c0_8 = arith.constant 0 : index
      %c0_9 = arith.constant 0 : index
      %20 = vector.load %arg4[%c0_8, %c0_9] : memref<8x128xf32, #tpu.memory_space<vmem>>, vector<8x128xf32>
      %21 = arith.mulf %10, %11 : vector<16x128xf32>
      %22 = vector.shape_cast %21 : vector<16x128xf32> to vector<2x8x128xf32>
      %cst_10 = arith.constant dense<0.000000e+00> : vector<8x128xf32>
      %23 = vector.multi_reduction <add>, %22, %cst_10 [0] : vector<2x8x128xf32> to vector<8x128xf32>
      %24 = arith.addf %20, %23 : vector<8x128xf32>
      %c0_11 = arith.constant 0 : index
      %c0_12 = arith.constant 0 : index
      %25 = vector.load %arg4[%c0_11, %c0_12] : memref<8x128xf32, #tpu.memory_space<vmem>>, vector<8x128xf32>
      tpu.vector_store %arg4[%c0_11, %c0_12], %24 {strides = array<i32>} : memref<8x128xf32, #tpu.memory_space<vmem>>, vector<8x128xf32>,
      %c0_13 = arith.constant 0 : index
      %c0_14 = arith.constant 0 : index
      %26 = vector.load %arg5[%c0_13, %c0_14] : memref<8x128xf32, #tpu.memory_space<vmem>>, vector<8x128xf32>
      %27 = arith.addf %10, %11 : vector<16x128xf32>
      %28 = vector.shape_cast %27 : vector<16x128xf32> to vector<2x8x128xf32>
      %cst_15 = arith.constant dense<0.000000e+00> : vector<8x128xf32>
      %29 = vector.multi_reduction <add>, %28, %cst_15 [0] : vector<2x8x128xf32> to vector<8x128xf32>
      %30 = arith.addf %26, %29 : vector<8x128xf32>
      %c0_16 = arith.constant 0 : index
      %c0_17 = arith.constant 0 : index
      %31 = vector.load %arg5[%c0_16, %c0_17] : memref<8x128xf32, #tpu.memory_space<vmem>>, vector<8x128xf32>
      tpu.vector_store %arg5[%c0_16, %c0_17], %30 {strides = array<i32>} : memref<8x128xf32, #tpu.memory_space<vmem>>, vector<8x128xf32>,
    } else {
    }
    %true = arith.constant true
    %17 = arith.xori %14, %true : i1
    %18 = arith.extui %17 : i1 to i32
    %c0_i32_7 = arith.constant 0 : i32
    %19 = arith.cmpi ne, %18, %c0_i32_7 : i32
    scf.if %19 {
      %20 = tpu.iota {dimensions = array<i32: 0>} : vector<16x128xi32>
      %21 = tpu.iota {dimensions = array<i32: 1>} : vector<16x128xi32>
      %c16_i32_8 = arith.constant 16 : i32
      %22 = arith.muli %4, %c16_i32_8 : i32
      %23 = vector.broadcast %22 : i32 to vector<16x128xi32>
      %24 = arith.addi %23, %20 : vector<16x128xi32>
      %c16_i32_9 = arith.constant 16 : i32
      %25 = vector.broadcast %c16_i32_9 : i32 to vector<16x128xi32>
      %26 = arith.cmpi slt, %24, %25 : vector<16x128xi32>
      %c16_i32_10 = arith.constant 16 : i32
      %27 = vector.broadcast %c16_i32_10 : i32 to vector<16x128xi32>
      %28 = arith.cmpi eq, %24, %27 : vector<16x128xi32>
      %c0_i32_11 = arith.constant 0 : i32
      %29 = vector.broadcast %c0_i32_11 : i32 to vector<16x128xi32>
      %30 = arith.cmpi slt, %21, %29 : vector<16x128xi32>
      %31 = arith.andi %28, %30 : vector<16x128xi1>
      %32 = arith.ori %26, %31 : vector<16x128xi1>
      %cst_12 = arith.constant 0.000000e+00 : f32
      %33 = vector.broadcast %cst_12 : f32 to vector<16x128xf32>
      %34 = arith.select %32, %10, %33 : vector<16x128xi1>, vector<16x128xf32>
      %cst_13 = arith.constant 0.000000e+00 : f32
      %35 = vector.broadcast %cst_13 : f32 to vector<16x128xf32>
      %36 = arith.select %32, %11, %35 : vector<16x128xi1>, vector<16x128xf32>
      %c0_14 = arith.constant 0 : index
      %c0_15 = arith.constant 0 : index
      %37 = vector.load %arg4[%c0_14, %c0_15] : memref<8x128xf32, #tpu.memory_space<vmem>>, vector<8x128xf32>
      %38 = arith.mulf %34, %36 : vector<16x128xf32>
      %39 = vector.shape_cast %38 : vector<16x128xf32> to vector<2x8x128xf32>
      %cst_16 = arith.constant dense<0.000000e+00> : vector<8x128xf32>
      %40 = vector.multi_reduction <add>, %39, %cst_16 [0] : vector<2x8x128xf32> to vector<8x128xf32>
      %41 = arith.addf %37, %40 : vector<8x128xf32>
      %c0_17 = arith.constant 0 : index
      %c0_18 = arith.constant 0 : index
      %42 = vector.load %arg4[%c0_17, %c0_18] : memref<8x128xf32, #tpu.memory_space<vmem>>, vector<8x128xf32>
      tpu.vector_store %arg4[%c0_17, %c0_18], %41 {strides = array<i32>} : memref<8x128xf32, #tpu.memory_space<vmem>>, vector<8x128xf32>,
      %c0_19 = arith.constant 0 : index
      %c0_20 = arith.constant 0 : index
      %43 = vector.load %arg5[%c0_19, %c0_20] : memref<8x128xf32, #tpu.memory_space<vmem>>, vector<8x128xf32>
      %44 = arith.addf %34, %36 : vector<16x128xf32>
      %45 = vector.shape_cast %44 : vector<16x128xf32> to vector<2x8x128xf32>
      %cst_21 = arith.constant dense<0.000000e+00> : vector<8x128xf32>
      %46 = vector.multi_reduction <add>, %45, %cst_21 [0] : vector<2x8x128xf32> to vector<8x128xf32>
      %47 = arith.addf %43, %46 : vector<8x128xf32>
      %c0_22 = arith.constant 0 : index
      %c0_23 = arith.constant 0 : index
      %48 = vector.load %arg5[%c0_22, %c0_23] : memref<8x128xf32, #tpu.memory_space<vmem>>, vector<8x128xf32>
      tpu.vector_store %arg5[%c0_22, %c0_23], %47 {strides = array<i32>} : memref<8x128xf32, #tpu.memory_space<vmem>>, vector<8x128xf32>,
    } else {
    }
    return
  }
  func.func @transform_0(%arg0: i32, %arg1: i32) -> (i32, i32) {
    %c1_i32 = arith.constant 1 : i32
    %0 = arith.muli %arg0, %c1_i32 : i32
    %1 = arith.addi %0, %arg1 : i32
    %c0_i32 = arith.constant 0 : i32
    %2 = arith.minsi %1, %c0_i32 : i32
    %c0_i32_0 = arith.constant 0 : i32
    %c0_i32_1 = arith.constant 0 : i32
    return %2, %c0_i32_0 : i32, i32
  }
  func.func @transform_1(%arg0: i32, %arg1: i32) -> (i32, i32) {
    %c1_i32 = arith.constant 1 : i32
    %0 = arith.muli %arg0, %c1_i32 : i32
    %1 = arith.addi %0, %arg1 : i32
    %c0_i32 = arith.constant 0 : i32
    %2 = arith.minsi %1, %c0_i32 : i32
    %c0_i32_0 = arith.constant 0 : i32
    %c0_i32_1 = arith.constant 0 : i32
    return %2, %c0_i32_0 : i32, i32
  }
  func.func @transform_2(%arg0: i32, %arg1: i32) -> (i32, i32) {
    %c0_i32 = arith.constant 0 : i32
    %c0_i32_0 = arith.constant 0 : i32
    return %arg0, %c0_i32 : i32, i32
  }
  func.func @transform_3(%arg0: i32, %arg1: i32) -> (i32, i32) {
    %c0_i32 = arith.constant 0 : i32
    %c0_i32_0 = arith.constant 0 : i32
    return %arg0, %c0_i32 : i32, i32
  }
}

</mosaic_0001>

<llo_original>
// kernel: tpu_custom_call.1
$region0: #{tpu_custom_call.1}
  #allocation0 [shape = 'u32[]', space=smem, size = 0x4, offset = 0x4, fixed_abs, tag = 'smem constant byte address 0x4 - core index']
  #allocation1 [shape = 'u32[144,128]{1,0:T(1,128)}', space=vmem, size = 0x12000, scoped, tag = 'internal scratch']
  %s0 = inlined_call_operand.hbm [shape: f32[16,128], index: 0, kind: input, shape index: {}]
  %s1 = inlined_call_operand.hbm [shape: f32[16,128], index: 1, kind: input, shape index: {}]
  %s2 = inlined_call_operand.hbm [shape: f32[8,128], index: 2, kind: output, shape index: {0}]
  %s3 = inlined_call_operand.hbm [shape: f32[8,128], index: 3, kind: output, shape index: {1}]
  %4 = xla_tuple %s2, %s3
  %s5 = sld [smem:[#allocation0]]
  $region46: #{tpu_custom_call.1} parent=0
    _
  %s7 = ssub.s32 1, %s5
  %s8 = scalar_select 0, %s7, %s5
  $region1: #{tpu_custom_call.1} parent=0
    #allocation2 [shape = 'u8[8192]{0}', space=vmem, size = 0x2000, scoped, tag = 'input window, operand 0, single buffered']
    #allocation3 [shape = 's32[1]{0}', space=sflag, size = 0x4, scoped, tag = 'scoped memory for tpu_custom_call.1']
    #allocation4 [shape = 's32[1]{0}', space=sflag, size = 0x4, scoped, tag = 'scoped memory for tpu_custom_call.1']
    #allocation5 [shape = 'u8[8192]{0}', space=vmem, size = 0x2000, scoped, tag = 'input window, operand 1, single buffered']
    #allocation6 [shape = 's32[1]{0}', space=sflag, size = 0x4, scoped, tag = 'scoped memory for tpu_custom_call.1']
    #allocation7 [shape = 'u8[4096]{0}', space=vmem, size = 0x1000, scoped, tag = 'output window, operand 0, single buffered']
    #allocation8 [shape = 'u8[4096]{0}', space=vmem, size = 0x1000, scoped, tag = 'output window, operand 1, single buffered']
    #allocation9 [shape = 's32[1]{0}', space=sflag, size = 0x4, scoped, tag = 'scoped memory for tpu_custom_call.1']
    %9 = vsyncpa [#allocation3], 0
    %10 = vsyncpa [#allocation6], 0
    %11 = vsyncpa [#allocation4], 0
    %12 = vsyncpa [#allocation9], 0
    // Predicated region
    $region2: #{tpu_custom_call.1} parent=1 // pred_check
      _
    $region3: #{tpu_custom_call.1} parent=1 // pred_check_branch
      %14 = sbr.rel (0) target = $region5
    $region4: #{tpu_custom_call.1} parent=1 // pred_region
      %s15 = sadd.s32 0, 0
      %p16 = scmp.lt.s32.totalorder %s15, 0
      %s17 = scalar_select %p16, %s15, 0
      %s18 = smul.u32 2, %s17
      %s20 = ssub.s32 256, 256
      %21 = vsyncadd [#allocation3], %s20
      %s22 = smul.addr %s18, 128
      %s23 = scalar_lea.hbm %s0, %s22
      %s24 = sshll.u32 [#allocation2], 4
      %s25 = int_to_ptr.vmem [resolvable:$true] %s24
      %30 = dma.hbm_to_vmem [thread:$0]  %s23, 256, %s25, [#allocation3], 128, 128, 8
    $region5: #{tpu_custom_call.1} parent=1 // pred_fallthru
      _
    // Predicated region
    $region6: #{tpu_custom_call.1} parent=1 // pred_check
      _
    $region7: #{tpu_custom_call.1} parent=1 // pred_check_branch
      %32 = sbr.rel (0) target = $region9
    $region8: #{tpu_custom_call.1} parent=1 // pred_region
      %s33 = sadd.s32 0, 0
      %p34 = scmp.lt.s32.totalorder %s33, 0
      %s35 = scalar_select %p34, %s33, 0
      %s36 = smul.u32 2, %s35
      %s38 = ssub.s32 256, 256
      %39 = vsyncadd [#allocation6], %s38
      %s40 = smul.addr %s36, 128
      %s41 = scalar_lea.hbm %s1, %s40
      %s42 = sshll.u32 [#allocation5], 4
      %s43 = int_to_ptr.vmem [resolvable:$true] %s42
      %48 = dma.hbm_to_vmem [thread:$0]  %s41, 256, %s43, [#allocation6], 128, 128, 8
    $region9: #{tpu_custom_call.1} parent=1 // pred_fallthru
      _
    // Predicated region
    $region10: #{tpu_custom_call.1} parent=1 // pred_check
      _
    $region11: #{tpu_custom_call.1} parent=1 // pred_check_branch
      %50 = sbr.rel (0) target = $region13
    $region12: #{tpu_custom_call.1} parent=1 // pred_region
      %51 = dma.done [#allocation3], 256
    $region13: #{tpu_custom_call.1} parent=1 // pred_fallthru
      _
    // Predicated region
    $region14: #{tpu_custom_call.1} parent=1 // pred_check
      _
    $region15: #{tpu_custom_call.1} parent=1 // pred_check_branch
      %53 = sbr.rel (0) target = $region17
    $region16: #{tpu_custom_call.1} parent=1 // pred_region
      %54 = dma.done [#allocation6], 256
    $region17: #{tpu_custom_call.1} parent=1 // pred_fallthru
      _
    %s55 = sadd.s32 0, 0
    %p56 = scmp.lt.s32.totalorder %s55, 0
    %s57 = scalar_select %p56, %s55, 0
    %s58 = smul.u32 2, %s57
    %s59 = sadd.s32 0, 0
    %p60 = scmp.lt.s32.totalorder %s59, 0
    %s61 = scalar_select %p60, %s59, 0
    %s62 = smul.u32 2, %s61
    %p63 = scmp.eq.s32.totalorder 0, 0
    // Predicated region
    $region18: #{tpu_custom_call.1} parent=1 // pred_check
      %p64 = pneg %p63
    $region19: #{tpu_custom_call.1} parent=1 // pred_check_branch
      %66 = sbr.rel (%p64) target = $region21
    $region20: #{tpu_custom_call.1} parent=1 // pred_region
      %67 = vst [vmem:[#allocation7] sm:$0xff] 0.0
      %68 = vst [vmem:[#allocation8] sm:$0xff] 0.0
    $region21: #{tpu_custom_call.1} parent=1 // pred_fallthru
      _
    %s69 = sadd.s32 0, 0
    %v70 = vld [vmem:[#allocation2] sm:$0xff]
    %v71 = vld [vmem:[#allocation2 + $0x8] sm:$0xff]
    %v72 = vxor.u32 %v70, 2147483648
    %v73 = vxor.u32 %v71, 2147483648
    %v74 = vmul.f32 %v72, 1.442695
    %v75 = vpow.pop %v74
    %v76 = vmul.f32 %v73, 1.442695
    %v77 = vpow.pop %v76
    %v78 = vadd.f32 %v75, 1.0
    %v79 = vadd.f32 %v77, 1.0
    %v80 = vrcp.pop %v78
    %v81 = vmul.f32 1.0, %v80
    %v82 = vrcp.pop %v79
    %v83 = vmul.f32 1.0, %v82
    %v84 = vld [vmem:[#allocation5] sm:$0xff]
    %v85 = vld [vmem:[#allocation5 + $0x8] sm:$0xff]
    %s86 = sadd.s32 %s69, 1
    %s87 = smul.u32 %s86, 16
    %p88 = scmp.le.s32.totalorder %s87, 16
    // Predicated region
    $region22: #{tpu_custom_call.1} parent=1 // pred_check
      %p89 = pneg %p88
    $region23: #{tpu_custom_call.1} parent=1 // pred_check_branch
      %91 = sbr.rel (%p89) target = $region25
    $region24: #{tpu_custom_call.1} parent=1 // pred_region
      %v92 = vld [vmem:[#allocation7] sm:$0xff]
      %v93 = vmul.f32 %v81, %v84
      %v94 = vmul.f32 %v83, %v85
      %v95 = vadd.f32 %v93, %v94
      %v96 = vadd.f32 %v92, %v95
      %97 = vst [vmem:[#allocation7] sm:$0xff] %v96
      %v98 = vld [vmem:[#allocation8] sm:$0xff]
      %v99 = vadd.f32 %v81, %v84
      %v100 = vadd.f32 %v83, %v85
      %v101 = vadd.f32 %v99, %v100
      %v102 = vadd.f32 %v98, %v101
      %103 = vst [vmem:[#allocation8] sm:$0xff] %v102
    $region25: #{tpu_custom_call.1} parent=1 // pred_fallthru
      _
    %p104 = scmp.gt.s32.totalorder %s87, 16
    // Predicated region
    $region26: #{tpu_custom_call.1} parent=1 // pred_check
      %p105 = pneg %p104
    $region27: #{tpu_custom_call.1} parent=1 // pred_check_branch
      %107 = sbr.rel (%p105) target = $region29
    $region28: #{tpu_custom_call.1} parent=1 // pred_region
      %v108 = vlaneseq
      %v109 = vshrl.u32 %v108, 7
      %v110 = vadd.s32 %v109, 8
      %v111 = vlaneseq
      %v112 = vand.u32 %v111, 127
      %s113 = smul.u32 %s69, 16
      %v114 = vstv %s113
      %v115 = vadd.s32 %v114, %v109
      %v116 = vadd.s32 %v114, %v110
      %vm117 = vcmp.lt.s32.totalorder %v115, 16
      %vm118 = vcmp.lt.s32.totalorder %v116, 16
      %vm119 = vcmp.eq.s32.totalorder %v115, 16
      %vm120 = vcmp.eq.s32.totalorder %v116, 16
      %vm121 = vcmp.lt.s32.totalorder %v112, 0
      %vm122 = vmand %vm119, %vm121
      %vm123 = vmand %vm120, %vm121
      %vm124 = vmor %vm117, %vm122
      %vm125 = vmor %vm118, %vm123
      %v126 = vsel %vm124, %v81, 0.0
      %v127 = vsel %vm125, %v83, 0.0
      %v128 = vsel %vm124, %v84, 0.0
      %v129 = vsel %vm125, %v85, 0.0
      %v130 = vld [vmem:[#allocation7] sm:$0xff]
      %v131 = vmul.f32 %v126, %v128
      %v132 = vmul.f32 %v127, %v129
      %v133 = vadd.f32 %v131, %v132
      %v134 = vadd.f32 %v130, %v133
      %135 = vst [vmem:[#allocation7] sm:$0xff] %v134
      %v136 = vld [vmem:[#allocation8] sm:$0xff]
      %v137 = vadd.f32 %v126, %v128
      %v138 = vadd.f32 %v127, %v129
      %v139 = vadd.f32 %v137, %v138
      %v140 = vadd.f32 %v136, %v139
      %141 = vst [vmem:[#allocation8] sm:$0xff] %v140
    $region29: #{tpu_custom_call.1} parent=1 // pred_fallthru
      _
    // Predicated region
    $region30: #{tpu_custom_call.1} parent=1 // pred_check
      _
    $region31: #{tpu_custom_call.1} parent=1 // pred_check_branch
      %143 = sbr.rel (0) target = $region33
    $region32: #{tpu_custom_call.1} parent=1 // pred_region
      %s145 = ssub.s32 128, 128
      %146 = vsyncadd [#allocation4], %s145
      %s148 = sshll.u32 [#allocation7], 4
      %s149 = int_to_ptr.vmem [resolvable:$true] %s148
      %151 = dma.vmem_to_hbm [thread:$0]  %s149, 128, %s2, [#allocation4]
    $region33: #{tpu_custom_call.1} parent=1 // pred_fallthru
      _
    // Predicated region
    $region34: #{tpu_custom_call.1} parent=1 // pred_check
      _
    $region35: #{tpu_custom_call.1} parent=1 // pred_check_branch
      %153 = sbr.rel (0) target = $region37
    $region36: #{tpu_custom_call.1} parent=1 // pred_region
      %s155 = ssub.s32 128, 128
      %156 = vsyncadd [#allocation9], %s155
      %s158 = sshll.u32 [#allocation8], 4
      %s159 = int_to_ptr.vmem [resolvable:$true] %s158
      %161 = dma.vmem_to_hbm [thread:$0]  %s159, 128, %s3, [#allocation9]
    $region37: #{tpu_custom_call.1} parent=1 // pred_fallthru
      _
    // Predicated region
    $region38: #{tpu_custom_call.1} parent=1 // pred_check
      _
    $region39: #{tpu_custom_call.1} parent=1 // pred_check_branch
      %163 = sbr.rel (0) target = $region41
    $region40: #{tpu_custom_call.1} parent=1 // pred_region
      %164 = dma.done [#allocation4], 128
    $region41: #{tpu_custom_call.1} parent=1 // pred_fallthru
      _
    // Predicated region
    $region42: #{tpu_custom_call.1} parent=1 // pred_check
      _
    $region43: #{tpu_custom_call.1} parent=1 // pred_check_branch
      %166 = sbr.rel (0) target = $region45
    $region44: #{tpu_custom_call.1} parent=1 // pred_region
      %167 = dma.done [#allocation9], 128
    $region45: #{tpu_custom_call.1} parent=1 // pred_fallthru
      _
    %168 = vsyncpa [#allocation3], 1
    %169 = vsyncpa [#allocation6], 1
    %170 = vsyncpa [#allocation4], 1
    %171 = vsyncpa [#allocation9], 1

</llo_original>
